<compile_context>
chip_gen: v6e
topology: v6e:2x2x1
jax: 0.10.0
libtpu: 0.0.40
codegen_flags: <defaults>
</compile_context>

<pallas_src>
import jax
import jax.numpy as jnp
from jax.experimental import pallas as pl
from jax.experimental.pallas import tpu as pltpu


def _round_up(x: int, m: int) -> int:
    return (x + m - 1) // m * m


def mf_kernel(u_ref, it_ref, bias_ref, o_ref):
    """One batch tile of the MF forward pass.

    u_ref, it_ref : (TB, D) f32  gathered user / item embedding rows.
    bias_ref      : (1, TB) f32  user_bias + item_bias + mu (lane dense).
    o_ref         : (1, TB) f32  predictions (lane dense).
    """
    p = u_ref[...] * it_ref[...]                               # (TB, D)  VPU
    ones = jnp.ones((1, p.shape[1]), jnp.float32)              # (1, D)
    # Row-dot as ones(1,D) . p^T on the MXU (contract the last dim of both
    # operands).  The batch lands on the lane axis, so the store below is an
    # unmasked, 128-lane-dense vst and the output DMA slab is lane dense.
    dot = jax.lax.dot_general(
        ones, p,
        dimension_numbers=(((1,), (1,)), ((), ())),
        precision=jax.lax.Precision.HIGHEST,                   # true-f32 accumulation
        preferred_element_type=jnp.float32,
    )                                                          # (1, TB)
    o_ref[...] = dot + bias_ref[...]


def mf_forward(user_indices, item_indices, params, *, tb=1024):
    """Pallas-backed equivalent of MF.forward(user_indices, item_indices)."""
    user_emb = params["user_emb"]
    item_emb = params["item_emb"]
    B = int(user_indices.shape[0])
    D = int(user_emb.shape[1])

    def _plain(uidx, iidx):
        u = user_emb[uidx]
        it = item_emb[iidx]
        return (jnp.sum(u * it, axis=1)
                + params["user_bias"][uidx].reshape(-1)
                + params["item_bias"][iidx].reshape(-1)
                + params["mu"][0])

    # Tiny batches: the fixed pallas_call launch cost exceeds the whole
    # computation; plain XLA fuses this fine.
    if B < 32:
        return _plain(user_indices, item_indices)

    # ---- batch-tile selection (sweepable via `tb`) ---------------------------
    # Budget: 2 embedding inputs x 2 pipeline buffers x (tb x D x 4B) must stay
    # well under the default scoped-VMEM limit on every generation
    # (16 MiB v5e, 32 MiB v6e/v7x; v7x has only 64 MiB physical VMEM).
    vmem_budget = 8 * 1024 * 1024
    tb_cap = max(128, vmem_budget // (2 * 2 * D * 4))
    tb = min(tb, tb_cap, _round_up(B, 128))
    tb = max(128, (tb // 128) * 128)      # lane-aligned tiles keep every block legal
    if _round_up(B, tb) == tb and tb >= 256 and tb % 256 == 0:
        tb //= 2                          # keep >=2 grid steps (v7x has 2 TensorCores)
    b_pad = _round_up(B, tb)
    grid = b_pad // tb

    # Pad the *indices* (free) instead of the gathered activations.
    if b_pad != B:
        pad = b_pad - B
        user_idx = jnp.concatenate(
            [user_indices, jnp.zeros((pad,), user_indices.dtype)])
        item_idx = jnp.concatenate(
            [item_indices, jnp.zeros((pad,), item_indices.dtype)])
    else:
        user_idx, item_idx = user_indices, item_indices

    # ---- glue: embedding-row gathers (plain JAX / XLA gather) ----------------
    # TODO(synk): fuse the gather into the kernel (embedding tables kept in HBM
    # via memory_space=pl.ANY + scalar-prefetched indices driving per-row async
    # DMA gathers) so u/it are never materialized in HBM and re-read (~2x the
    # HBM traffic of a fused gather; biggest remaining lever, esp. on v5e).
    u = user_emb[user_idx].astype(jnp.float32)                 # (b_pad, D)
    it = item_emb[item_idx].astype(jnp.float32)                # (b_pad, D)

    # Fold user_bias + item_bias + mu into ONE lane-dense (1, b_pad) operand
    # instead of three tiny 1-lane-wide streams + an SMEM scalar.
    bias = (params["user_bias"][user_idx].reshape(-1)
            + params["item_bias"][item_idx].reshape(-1)
            + params["mu"][0]).astype(jnp.float32).reshape(1, b_pad)

    # NOTE: if D < 128 (e.g. n_components=32) the (tb, D) tiles use only D of
    # 128 lanes per vreg; the kernel is HBM-bound so this wastes VPU lanes,
    # not bandwidth.  Padding n_components to 128 at model level would fix it.
    out = pl.pallas_call(
        mf_kernel,
        out_shape=jax.ShapeDtypeStruct((1, b_pad), jnp.float32),
        grid=(grid,),
        in_specs=[
            pl.BlockSpec((tb, D), lambda g: (g, 0)),           # user embedding rows
            pl.BlockSpec((tb, D), lambda g: (g, 0)),           # item embedding rows
            pl.BlockSpec((1, tb), lambda g: (0, g)),           # combined bias (lane dense)
        ],
        out_specs=pl.BlockSpec((1, tb), lambda g: (0, g)),     # lane-dense output slab
        compiler_params=pltpu.CompilerParams(
            dimension_semantics=("parallel",),                 # megacore-shardable batch axis
        ),
    )(u, it, bias)

    return out.reshape(-1)[:B]                                 # (B,)


def init_mf_params(key, n_users, n_items, n_components):
    ku, ki = jax.random.split(key)
    return {
        # torch: .normal_(0, 0.1)
        "user_emb": 0.1 * jax.random.normal(ku, (n_users, n_components), jnp.float32),
        "item_emb": 0.1 * jax.random.normal(ki, (n_items, n_components), jnp.float32),
        # torch: zeros
        "user_bias": jnp.zeros((n_users, 1), jnp.float32),
        "item_bias": jnp.zeros((n_items, 1), jnp.float32),
        "mu": jnp.zeros((1,), jnp.float32),
    }


if __name__ == "__main__":
    key = jax.random.PRNGKey(0)
    kp, ku1, ki1, ku2, ki2, ku3, ki3 = jax.random.split(key, 7)

    n_users, n_items, n_components = 64, 96, 32
    params = init_mf_params(kp, n_users, n_items, n_components)

    def reference(uidx, iidx):
        u = params["user_emb"][uidx]
        it = params["item_emb"][iidx]
        return (jnp.sum(u * it, axis=1)
                + params["user_bias"][uidx].reshape(-1)
                + params["item_bias"][iidx].reshape(-1)
                + params["mu"][0])

    # Main case: multi-step grid through the Pallas kernel.
    B = 512
    uidx = jax.random.randint(ku1, (B,), 0, n_users)
    iidx = jax.random.randint(ki1, (B,), 0, n_items)
    y = jax.block_until_ready(mf_forward(uidx, iidx, params))
    assert y.shape == (B,)
    assert jnp.allclose(y, reference(uidx, iidx), atol=1e-5, rtol=1e-5)

    # Ragged batch (not a tile multiple): exercises the index-padding path.
    B2 = 100
    uidx2 = jax.random.randint(ku2, (B2,), 0, n_users)
    iidx2 = jax.random.randint(ki2, (B2,), 0, n_items)
    y2 = jax.block_until_ready(mf_forward(uidx2, iidx2, params))
    assert y2.shape == (B2,)
    assert jnp.allclose(y2, reference(uidx2, iidx2), atol=1e-5, rtol=1e-5)

    # Tiny batch: plain-XLA fallback (pallas launch cost > whole computation).
    B3 = 8
    uidx3 = jax.random.randint(ku3, (B3,), 0, n_users)
    iidx3 = jax.random.randint(ki3, (B3,), 0, n_items)
    y3 = jax.block_until_ready(mf_forward(uidx3, iidx3, params))
    assert y3.shape == (B3,)
    assert jnp.allclose(y3, reference(uidx3, iidx3), atol=1e-5, rtol=1e-5)

    print("KERNEL_OK")
</pallas_src>

<mosaic_0001>
module attributes {stable_mosaic.version = 11 : i64} {
  func.func @mf_kernel(%arg0: i32, %arg1: memref<256x32xf32, #tpu.memory_space<vmem>>, %arg2: memref<256x32xf32, #tpu.memory_space<vmem>>, %arg3: memref<1x256xf32, #tpu.memory_space<vmem>>, %arg4: memref<1x256xf32, #tpu.memory_space<vmem>>) attributes {dimension_semantics = [#tpu.dimension_semantics<parallel>], iteration_bounds = array<i64: 2>, scalar_prefetch = 0 : i64, scratch_operands = 0 : i64, tpu.core_type = #tpu.core_type<tc>, window_params = [{transform_indices = @transform_0, window_bounds = array<i64: 256, 32>}, {transform_indices = @transform_1, window_bounds = array<i64: 256, 32>}, {transform_indices = @transform_2, window_bounds = array<i64: 1, 256>}, {transform_indices = @transform_3, window_bounds = array<i64: 1, 256>}]} {
    %c0 = arith.constant 0 : index
    %c0_0 = arith.constant 0 : index
    %0 = vector.load %arg1[%c0, %c0_0] : memref<256x32xf32, #tpu.memory_space<vmem>>, vector<256x32xf32>
    %c0_1 = arith.constant 0 : index
    %c0_2 = arith.constant 0 : index
    %1 = vector.load %arg2[%c0_1, %c0_2] : memref<256x32xf32, #tpu.memory_space<vmem>>, vector<256x32xf32>
    %2 = arith.mulf %0, %1 : vector<256x32xf32>
    %cst = arith.constant 1.000000e+00 : f32
    %3 = vector.broadcast %cst : f32 to vector<1x32xf32>
    %cst_3 = arith.constant dense<0.000000e+00> : vector<1x256xf32>
    %4 = tpu.matmul %3, %2, %cst_3 {dimension_numbers = #tpu.dot_dimension_numbers<[1], [1], [0], [0], [0, 0, 1, 0], [], []>, precision = #tpu.contract_precision<fp32>} : vector<1x32xf32>, vector<256x32xf32>, vector<1x256xf32> -> vector<1x256xf32>
    %c0_4 = arith.constant 0 : index
    %c0_5 = arith.constant 0 : index
    %5 = vector.load %arg3[%c0_4, %c0_5] : memref<1x256xf32, #tpu.memory_space<vmem>>, vector<1x256xf32>
    %6 = arith.addf %4, %5 : vector<1x256xf32>
    %c0_6 = arith.constant 0 : index
    %c0_7 = arith.constant 0 : index
    %7 = vector.load %arg4[%c0_6, %c0_7] : memref<1x256xf32, #tpu.memory_space<vmem>>, vector<1x256xf32>
    tpu.vector_store %arg4[%c0_6, %c0_7], %6 {strides = array<i32>} : memref<1x256xf32, #tpu.memory_space<vmem>>, vector<1x256xf32>,
    return
  }
  func.func @transform_0(%arg0: i32) -> (i32, i32) {
    %c0_i32 = arith.constant 0 : i32
    %c0_i32_0 = arith.constant 0 : i32
    return %arg0, %c0_i32 : i32, i32
  }
  func.func @transform_1(%arg0: i32) -> (i32, i32) {
    %c0_i32 = arith.constant 0 : i32
    %c0_i32_0 = arith.constant 0 : i32
    return %arg0, %c0_i32 : i32, i32
  }
  func.func @transform_2(%arg0: i32) -> (i32, i32) {
    %c0_i32 = arith.constant 0 : i32
    %c0_i32_0 = arith.constant 0 : i32
    return %c0_i32, %arg0 : i32, i32
  }
  func.func @transform_3(%arg0: i32) -> (i32, i32) {
    %c0_i32 = arith.constant 0 : i32
    %c0_i32_0 = arith.constant 0 : i32
    return %c0_i32, %arg0 : i32, i32
  }
}

</mosaic_0001>

<llo_original>
// kernel: tpu_custom_call.1
$region0: #{tpu_custom_call.1}
  #allocation0 [shape = 'u32[]', space=smem, size = 0x4, offset = 0x4, fixed_abs, tag = 'smem constant byte address 0x4 - core index']
  #allocation1 [shape = 'u32[144,128]{1,0:T(1,128)}', space=vmem, size = 0x12000, scoped, tag = 'internal scratch']
  %s0 = inlined_call_operand.vmem [shape: f32[512,32], index: 0, kind: input, shape index: {}]
  %s1 = inlined_call_operand.vmem [shape: f32[512,32], index: 1, kind: input, shape index: {}]
  %s2 = inlined_call_operand.vmem [shape: f32[1,512], index: 2, kind: input, shape index: {}]
  %s3 = inlined_call_operand.hbm [shape: f32[1,512], index: 3, kind: output, shape index: {}]
  %s4 = sld [smem:[#allocation0]]
  $region45: #{tpu_custom_call.1} parent=0
    _
  %s6 = ssub.s32 1, %s4
  %s7 = scalar_select 0, %s6, %s4
  $region1: #{tpu_custom_call.1} parent=0
    #allocation2 [shape = 'u8[2048]{0}', space=vmem, size = 0x800, scoped, tag = 'output window, operand 0']
    #allocation3 [shape = 's32[2]{0}', space=sflag, size = 0x8, scoped, tag = 'scoped memory for tpu_custom_call.1']
    %8 = vsyncpa [#allocation3], 0
    %s9 = scalar_lea.sflag [#allocation3], 1
    %10 = vsyncpa %s9, 0
    loop: start=0, step=1, limit=4
    $region2: #{tpu_custom_call.1} parent=1 // loop_pre_header
      _
    $region3: #{tpu_custom_call.1} parent=1 // loop_header
      %s12 = sphi 0, %s16
      %p13 = scmp.ge.s32.totalorder %s12, 4
      %s22 = sphi 0, %s24
      %s25 = sphi 0, %s22
      %s26 = sphi 0, %s25
      %s42 = sphi 0, %s26
      %s48 = sphi 0, %s50
      %s51 = sphi 0, %s48
      %s52 = sphi 0, %s51
      %s68 = sphi 0, %s52
      %s74 = sphi 0, %s76
      %s77 = sphi 0, %s74
      %s78 = sphi 0, %s77
      %s94 = sphi 0, %s78
      %s100 = sphi 0, %s102
      %s103 = sphi 0, %s100
      %s104 = sphi 0, %s103
      %s120 = sphi 0, %s104
    $region4: #{tpu_custom_call.1} parent=1 // loop_header_branch
      %15 = sbr.rel (%p13) target = $region8
    $region5: #{tpu_custom_call.1} parent=1 // loop_body
      %s17 = ssub.s32 %s12, 1
      %s18 = ssub.s32 %s12, 2
      %s19 = sadd.s32 %s12, 1
      %s20 = ssub.s32 %s12, %s19
      %p21 = scmp.eq.s32.totalorder %s20, 0
      %s23 = sadd.s32 %s22, 1
      %s24 = scalar_select %p21, %s22, %s23
      %p27 = pneg %p21
      %p28 = scmp.eq.s32.totalorder %s12, 1
      %p29 = por %p27, %p28
      %p30 = scmp.ne.s32.totalorder %s22, %s25
      %p31 = scmp.eq.s32.totalorder %s12, 0
      %p32 = por %p30, %p31
      %p33 = scmp.ne.s32.totalorder %s22, %s25
      %p34 = scmp.eq.s32.totalorder %s17, 1
      %p35 = por %p33, %p34
      %p36 = scmp.ne.s32.totalorder %s25, %s26
      %p37 = scmp.eq.s32.totalorder %s17, 0
      %p38 = por %p36, %p37
      %p39 = scmp.ne.s32.totalorder %s25, %s26
      %p40 = scmp.eq.s32.totalorder %s18, 1
      %p41 = por %p39, %p40
      %p43 = scmp.ne.s32.totalorder %s26, %s42
      %p44 = scmp.eq.s32.totalorder %s18, 0
      %p45 = por %p43, %p44
      %s46 = ssub.s32 %s12, %s19
      %p47 = scmp.eq.s32.totalorder %s46, 0
      %s49 = sadd.s32 %s48, 1
      %s50 = scalar_select %p47, %s48, %s49
      %p53 = pneg %p47
      %p54 = scmp.eq.s32.totalorder %s12, 1
      %p55 = por %p53, %p54
      %p56 = scmp.ne.s32.totalorder %s48, %s51
      %p57 = scmp.eq.s32.totalorder %s12, 0
      %p58 = por %p56, %p57
      %p59 = scmp.ne.s32.totalorder %s48, %s51
      %p60 = scmp.eq.s32.totalorder %s17, 1
      %p61 = por %p59, %p60
      %p62 = scmp.ne.s32.totalorder %s51, %s52
      %p63 = scmp.eq.s32.totalorder %s17, 0
      %p64 = por %p62, %p63
      %p65 = scmp.ne.s32.totalorder %s51, %s52
      %p66 = scmp.eq.s32.totalorder %s18, 1
      %p67 = por %p65, %p66
      %p69 = scmp.ne.s32.totalorder %s52, %s68
      %p70 = scmp.eq.s32.totalorder %s18, 0
      %p71 = por %p69, %p70
      %s72 = ssub.s32 %s12, %s19
      %p73 = scmp.eq.s32.totalorder %s72, 0
      %s75 = sadd.s32 %s74, 1
      %s76 = scalar_select %p73, %s74, %s75
      %p79 = pneg %p73
      %p80 = scmp.eq.s32.totalorder %s12, 1
      %p81 = por %p79, %p80
      %p82 = scmp.ne.s32.totalorder %s74, %s77
      %p83 = scmp.eq.s32.totalorder %s12, 0
      %p84 = por %p82, %p83
      %p85 = scmp.ne.s32.totalorder %s74, %s77
      %p86 = scmp.eq.s32.totalorder %s17, 1
      %p87 = por %p85, %p86
      %p88 = scmp.ne.s32.totalorder %s77, %s78
      %p89 = scmp.eq.s32.totalorder %s17, 0
      %p90 = por %p88, %p89
      %p91 = scmp.ne.s32.totalorder %s77, %s78
      %p92 = scmp.eq.s32.totalorder %s18, 1
      %p93 = por %p91, %p92
      %p95 = scmp.ne.s32.totalorder %s78, %s94
      %p96 = scmp.eq.s32.totalorder %s18, 0
      %p97 = por %p95, %p96
      %s98 = ssub.s32 %s12, %s19
      %p99 = scmp.eq.s32.totalorder %s98, 0
      %s101 = sadd.s32 %s100, 1
      %s102 = scalar_select %p99, %s100, %s101
      %p105 = pneg %p99
      %p106 = scmp.eq.s32.totalorder %s12, 1
      %p107 = por %p105, %p106
      %p108 = scmp.ne.s32.totalorder %s100, %s103
      %p109 = scmp.eq.s32.totalorder %s12, 0
      %p110 = por %p108, %p109
      %p111 = scmp.ne.s32.totalorder %s100, %s103
      %p112 = scmp.eq.s32.totalorder %s17, 1
      %p113 = por %p111, %p112
      %p114 = scmp.ne.s32.totalorder %s103, %s104
      %p115 = scmp.eq.s32.totalorder %s17, 0
      %p116 = por %p114, %p115
      %p117 = scmp.ne.s32.totalorder %s103, %s104
      %p118 = scmp.eq.s32.totalorder %s18, 1
      %p119 = por %p117, %p118
      %p121 = scmp.ne.s32.totalorder %s104, %s120
      %p122 = scmp.eq.s32.totalorder %s18, 0
      %p123 = por %p121, %p122
      %p124 = scmp.le.s32.totalorder 1, %s12
      %p125 = scmp.lt.s32.totalorder %s12, 3
      %p126 = pnand %p124, %p125
      %p127 = pneg %p126
      // Predicated region
      $region9: #{tpu_custom_call.1} parent=5 // pred_check
        _
      $region10: #{tpu_custom_call.1} parent=5 // pred_check_branch
        %129 = sbr.rel (%p126) target = $region12
      $region11: #{tpu_custom_call.1} parent=5 // pred_region
        %s130 = ssub.s32 %s12, 1
      $region12: #{tpu_custom_call.1} parent=5 // pred_fallthru
        _
      %p131 = scmp.lt.s32.totalorder %s12, 2
      // Predicated region
      $region13: #{tpu_custom_call.1} parent=5 // pred_check
        %p132 = pneg %p131
      $region14: #{tpu_custom_call.1} parent=5 // pred_check_branch
        %134 = sbr.rel (%p132) target = $region16
      $region15: #{tpu_custom_call.1} parent=5 // pred_region
        // Predicated region
        $region17: #{tpu_custom_call.1} parent=15 // pred_check
          %p135 = pneg %p32
        $region18: #{tpu_custom_call.1} parent=15 // pred_check_branch
          %137 = sbr.rel (%p135) target = $region20
        $region19: #{tpu_custom_call.1} parent=15 // pred_region
          %s138 = smul.u32 32, %s12
          %p139 = scmp.lt.s32.totalorder %s138, 63
          %s140 = scalar_select %p139, %s138, 63
          %s141 = smul.addr %s140, 8
          %s142 = scalar_lea.vmem %s0, %s141
          %s143 = smul.u32 32, %s12
        $region20: #{tpu_custom_call.1} parent=15 // pred_fallthru
          _
        // Predicated region
        $region21: #{tpu_custom_call.1} parent=15 // pred_check
          %p144 = pneg %p58
        $region22: #{tpu_custom_call.1} parent=15 // pred_check_branch
          %146 = sbr.rel (%p144) target = $region24
        $region23: #{tpu_custom_call.1} parent=15 // pred_region
          %s147 = smul.u32 32, %s12
          %p148 = scmp.lt.s32.totalorder %s147, 63
          %s149 = scalar_select %p148, %s147, 63
          %s150 = smul.addr %s149, 8
          %s151 = scalar_lea.vmem %s1, %s150
          %s152 = smul.u32 32, %s12
        $region24: #{tpu_custom_call.1} parent=15 // pred_fallthru
          _
        // Predicated region
        $region25: #{tpu_custom_call.1} parent=15 // pred_check
          %p153 = pneg %p84
        $region26: #{tpu_custom_call.1} parent=15 // pred_check_branch
          %155 = sbr.rel (%p153) target = $region28
        $region27: #{tpu_custom_call.1} parent=15 // pred_region
          %s156 = smul.u32 2, %s12
          %p157 = scmp.lt.s32.totalorder %s156, 3
          %s158 = scalar_select %p157, %s156, 3
          %s159 = scalar_lea.vmem %s2, %s158
          %s160 = smul.u32 2, %s12
        $region28: #{tpu_custom_call.1} parent=15 // pred_fallthru
          _
      $region16: #{tpu_custom_call.1} parent=5 // pred_fallthru
        _
      %p161 = scmp.le.s32.totalorder 1, %s12
      %p162 = scmp.lt.s32.totalorder %s12, 3
      %p163 = pnand %p161, %p162
      %p164 = pneg %p163
      // Predicated region
      $region29: #{tpu_custom_call.1} parent=5 // pred_check
        _
      $region30: #{tpu_custom_call.1} parent=5 // pred_check_branch
        %166 = sbr.rel (%p163) target = $region32
      $region31: #{tpu_custom_call.1} parent=5 // pred_region
        %s167 = ssub.s32 %s12, 1
        %s168 = smul.u32 32, %s17
        %p169 = scmp.lt.s32.totalorder %s168, 63
        %s170 = scalar_select %p169, %s168, 63
        %s171 = smul.addr %s170, 8
        %s172 = scalar_lea.vmem %s0, %s171
        %p173 = pneg %p38
        %p174 = pneg %p35
        %s175 = smul.u32 32, %s17
        %p176 = scmp.lt.s32.totalorder %s175, 63
        %s177 = scalar_select %p176, %s175, 63
        %s178 = smul.addr %s177, 8
        %s179 = scalar_lea.vmem %s1, %s178
        %p180 = pneg %p64
        %p181 = pneg %p61
        %s182 = smul.u32 2, %s17
        %p183 = scmp.lt.s32.totalorder %s182, 3
        %s184 = scalar_select %p183, %s182, 3
        %s185 = scalar_lea.vmem %s2, %s184
        %p186 = pneg %p90
        %p187 = pneg %p87
        %p188 = pneg %p116
        %p189 = pneg %p113
        %s190 = sand.u32 %s103, 1
        %s191 = scalar_lea.sflag [#allocation3], %s190
        %s192 = sand.u32 %s103, 1
        %s193 = smul.addr %s192, 2
        %s194 = scalar_lea.vmem [#allocation2], %s193
        %s195 = smul.u32 32, %s17
        %p196 = scmp.lt.s32.totalorder %s195, 63
        %s197 = scalar_select %p196, %s195, 63
        %s198 = smul.addr %s197, 8
        %s199 = scalar_lea.vmem %s0, %s198
        %s200 = smul.u32 32, %s17
        %s201 = smul.u32 32, %s17
        %p202 = scmp.lt.s32.totalorder %s201, 63
        %s203 = scalar_select %p202, %s201, 63
        %s204 = smul.addr %s203, 8
        %s205 = scalar_lea.vmem %s1, %s204
        %s206 = smul.u32 32, %s17
        %s207 = smul.u32 2, %s17
        %p208 = scmp.lt.s32.totalorder %s207, 3
        %s209 = scalar_select %p208, %s207, 3
        %s210 = scalar_lea.vmem %s2, %s209
        %s211 = smul.u32 2, %s17
        %s212 = smul.u32 2, %s17
        %v213 = vld [vmem:[%s199] sm:$0xff]
        %v214 = vld [vmem:[%s199 + $0x8] sm:$0xff]
        %v215 = vld [vmem:[%s199 + $0x10] sm:$0xff]
        %v216 = vld [vmem:[%s199 + $0x18] sm:$0xff]
        %v217 = vld [vmem:[%s199 + $0x20] sm:$0xff]
        %v218 = vld [vmem:[%s199 + $0x28] sm:$0xff]
        %v219 = vld [vmem:[%s199 + $0x30] sm:$0xff]
        %v220 = vld [vmem:[%s199 + $0x38] sm:$0xff]
        %v221 = vld [vmem:[%s199 + $0x40] sm:$0xff]
        %v222 = vld [vmem:[%s199 + $0x48] sm:$0xff]
        %v223 = vld [vmem:[%s199 + $0x50] sm:$0xff]
        %v224 = vld [vmem:[%s199 + $0x58] sm:$0xff]
        %v225 = vld [vmem:[%s199 + $0x60] sm:$0xff]
        %v226 = vld [vmem:[%s199 + $0x68] sm:$0xff]
        %v227 = vld [vmem:[%s199 + $0x70] sm:$0xff]
        %v228 = vld [vmem:[%s199 + $0x78] sm:$0xff]
        %v229 = vld [vmem:[%s199 + $0x80] sm:$0xff]
        %v230 = vld [vmem:[%s199 + $0x88] sm:$0xff]
        %v231 = vld [vmem:[%s199 + $0x90] sm:$0xff]
        %v232 = vld [vmem:[%s199 + $0x98] sm:$0xff]
        %v233 = vld [vmem:[%s199 + $0xa0] sm:$0xff]
        %v234 = vld [vmem:[%s199 + $0xa8] sm:$0xff]
        %v235 = vld [vmem:[%s199 + $0xb0] sm:$0xff]
        %v236 = vld [vmem:[%s199 + $0xb8] sm:$0xff]
        %v237 = vld [vmem:[%s199 + $0xc0] sm:$0xff]
        %v238 = vld [vmem:[%s199 + $0xc8] sm:$0xff]
        %v239 = vld [vmem:[%s199 + $0xd0] sm:$0xff]
        %v240 = vld [vmem:[%s199 + $0xd8] sm:$0xff]
        %v241 = vld [vmem:[%s199 + $0xe0] sm:$0xff]
        %v242 = vld [vmem:[%s199 + $0xe8] sm:$0xff]
        %v243 = vld [vmem:[%s199 + $0xf0] sm:$0xff]
        %v244 = vld [vmem:[%s199 + $0xf8] sm:$0xff]
        %v245 = vld [vmem:[%s205] sm:$0xff]
        %v246 = vld [vmem:[%s205 + $0x8] sm:$0xff]
        %v247 = vld [vmem:[%s205 + $0x10] sm:$0xff]
        %v248 = vld [vmem:[%s205 + $0x18] sm:$0xff]
        %v249 = vld [vmem:[%s205 + $0x20] sm:$0xff]
        %v250 = vld [vmem:[%s205 + $0x28] sm:$0xff]
        %v251 = vld [vmem:[%s205 + $0x30] sm:$0xff]
        %v252 = vld [vmem:[%s205 + $0x38] sm:$0xff]
        %v253 = vld [vmem:[%s205 + $0x40] sm:$0xff]
        %v254 = vld [vmem:[%s205 + $0x48] sm:$0xff]
        %v255 = vld [vmem:[%s205 + $0x50] sm:$0xff]
        %v256 = vld [vmem:[%s205 + $0x58] sm:$0xff]
        %v257 = vld [vmem:[%s205 + $0x60] sm:$0xff]
        %v258 = vld [vmem:[%s205 + $0x68] sm:$0xff]
        %v259 = vld [vmem:[%s205 + $0x70] sm:$0xff]
        %v260 = vld [vmem:[%s205 + $0x78] sm:$0xff]
        %v261 = vld [vmem:[%s205 + $0x80] sm:$0xff]
        %v262 = vld [vmem:[%s205 + $0x88] sm:$0xff]
        %v263 = vld [vmem:[%s205 + $0x90] sm:$0xff]
        %v264 = vld [vmem:[%s205 + $0x98] sm:$0xff]
        %v265 = vld [vmem:[%s205 + $0xa0] sm:$0xff]
        %v266 = vld [vmem:[%s205 + $0xa8] sm:$0xff]
        %v267 = vld [vmem:[%s205 + $0xb0] sm:$0xff]
        %v268 = vld [vmem:[%s205 + $0xb8] sm:$0xff]
        %v269 = vld [vmem:[%s205 + $0xc0] sm:$0xff]
        %v270 = vld [vmem:[%s205 + $0xc8] sm:$0xff]
        %v271 = vld [vmem:[%s205 + $0xd0] sm:$0xff]
        %v272 = vld [vmem:[%s205 + $0xd8] sm:$0xff]
        %v273 = vld [vmem:[%s205 + $0xe0] sm:$0xff]
        %v274 = vld [vmem:[%s205 + $0xe8] sm:$0xff]
        %v275 = vld [vmem:[%s205 + $0xf0] sm:$0xff]
        %v276 = vld [vmem:[%s205 + $0xf8] sm:$0xff]
        %v277 = vmul.f32 %v213, %v245
        %v278 = vmul.f32 %v214, %v246
        %v279 = vmul.f32 %v215, %v247
        %v280 = vmul.f32 %v216, %v248
        %v281 = vmul.f32 %v217, %v249
        %v282 = vmul.f32 %v218, %v250
        %v283 = vmul.f32 %v219, %v251
        %v284 = vmul.f32 %v220, %v252
        %v285 = vmul.f32 %v221, %v253
        %v286 = vmul.f32 %v222, %v254
        %v287 = vmul.f32 %v223, %v255
        %v288 = vmul.f32 %v224, %v256
        %v289 = vmul.f32 %v225, %v257
        %v290 = vmul.f32 %v226, %v258
        %v291 = vmul.f32 %v227, %v259
        %v292 = vmul.f32 %v228, %v260
        %v293 = vmul.f32 %v229, %v261
        %v294 = vmul.f32 %v230, %v262
        %v295 = vmul.f32 %v231, %v263
        %v296 = vmul.f32 %v232, %v264
        %v297 = vmul.f32 %v233, %v265
        %v298 = vmul.f32 %v234, %v266
        %v299 = vmul.f32 %v235, %v267
        %v300 = vmul.f32 %v236, %v268
        %v301 = vmul.f32 %v237, %v269
        %v302 = vmul.f32 %v238, %v270
        %v303 = vmul.f32 %v239, %v271
        %v304 = vmul.f32 %v240, %v272
        %v305 = vmul.f32 %v241, %v273
        %v306 = vmul.f32 %v242, %v274
        %v307 = vmul.f32 %v243, %v275
        %v308 = vmul.f32 %v244, %v276
        %v309 = vld [vmem:[%s210] sm:$0x3]
        %v311 = vlaneseq
        %v312 = vshrl.u32 %v311, 7
        %v313 = vsub.s32 0, %v312
        %v314 = vrot.slane %v309, %v313
        %v315 = vlaneseq
        %v316 = vshrl.u32 %v315, 7
        %v317 = vsub.s32 1, %v316
        %v318 = vrot.slane %v309, %v317
        %vm321 = vcmask 261120
        %v323 = vsel %vm321, 1.0, 0
        %v326 = vsel %vm321, %v277, 0
        %v329 = vsel %vm321, %v278, 0
        %v332 = vsel %vm321, %v279, 0
        %v335 = vsel %vm321, %v280, 0
        %v338 = vsel %vm321, %v281, 0
        %v341 = vsel %vm321, %v282, 0
        %v344 = vsel %vm321, %v283, 0
        %v347 = vsel %vm321, %v284, 0
        %v350 = vsel %vm321, %v285, 0
        %v353 = vsel %vm321, %v286, 0
        %v356 = vsel %vm321, %v287, 0
        %v359 = vsel %vm321, %v288, 0
        %v362 = vsel %vm321, %v289, 0
        %v365 = vsel %vm321, %v290, 0
        %v368 = vsel %vm321, %v291, 0
        %v371 = vsel %vm321, %v292, 0
        %v374 = vsel %vm321, %v293, 0
        %v377 = vsel %vm321, %v294, 0
        %v380 = vsel %vm321, %v295, 0
        %v383 = vsel %vm321, %v296, 0
        %v386 = vsel %vm321, %v297, 0
        %v389 = vsel %vm321, %v298, 0
        %v392 = vsel %vm321, %v299, 0
        %v395 = vsel %vm321, %v300, 0
        %v398 = vsel %vm321, %v301, 0
        %v401 = vsel %vm321, %v302, 0
        %v404 = vsel %vm321, %v303, 0
        %v407 = vsel %vm321, %v304, 0
        %v410 = vsel %vm321, %v305, 0
        %v413 = vsel %vm321, %v306, 0
        %v416 = vsel %vm321, %v307, 0
        %v419 = vsel %vm321, %v308, 0
        %421 = vmatprep.subr.mxu0 0.0
        %v422 = vand.u32 %v371, 4294901760
        %423 = vmatpush1.xpose.msra.mxu0 %v422
        %424 = vmatprep.subr.mxu0 0.0
        %v425 = vand.u32 %v368, 4294901760
        %426 = vmatpush1.xpose.msra.mxu0 %v425
        %427 = vmatprep.subr.mxu0 0.0
        %v428 = vand.u32 %v365, 4294901760
        %429 = vmatpush1.xpose.msra.mxu0 %v428
        %430 = vmatprep.subr.mxu0 0.0
        %v431 = vand.u32 %v362, 4294901760
        %432 = vmatpush1.xpose.msra.mxu0 %v431
        %433 = vmatprep.subr.mxu0 0.0
        %v434 = vand.u32 %v359, 4294901760
        %435 = vmatpush1.xpose.msra.mxu0 %v434
        %436 = vmatprep.subr.mxu0 0.0
        %v437 = vand.u32 %v356, 4294901760
        %438 = vmatpush1.xpose.msra.mxu0 %v437
        %439 = vmatprep.subr.mxu0 0.0
        %v440 = vand.u32 %v353, 4294901760
        %441 = vmatpush1.xpose.msra.mxu0 %v440
        %442 = vmatprep.subr.mxu0 0.0
        %v443 = vand.u32 %v350, 4294901760
        %444 = vmatpush1.xpose.msra.mxu0 %v443
        %445 = vmatprep.subr.mxu0 0.0
        %v446 = vand.u32 %v347, 4294901760
        %447 = vmatpush1.xpose.msra.mxu0 %v446
        %448 = vmatprep.subr.mxu0 0.0
        %v449 = vand.u32 %v344, 4294901760
        %450 = vmatpush1.xpose.msra.mxu0 %v449
        %451 = vmatprep.subr.mxu0 0.0
        %v452 = vand.u32 %v341, 4294901760
        %453 = vmatpush1.xpose.msra.mxu0 %v452
        %454 = vmatprep.subr.mxu0 0.0
        %v455 = vand.u32 %v338, 4294901760
        %456 = vmatpush1.xpose.msra.mxu0 %v455
        %457 = vmatprep.subr.mxu0 0.0
        %v458 = vand.u32 %v335, 4294901760
        %459 = vmatpush1.xpose.msra.mxu0 %v458
        %460 = vmatprep.subr.mxu0 0.0
        %v461 = vand.u32 %v332, 4294901760
        %462 = vmatpush1.xpose.msra.mxu0 %v461
        %463 = vmatprep.subr.mxu0 0.0
        %v464 = vand.u32 %v329, 4294901760
        %465 = vmatpush1.xpose.msra.mxu0 %v464
        %466 = vmatprep.subr.mxu0 0.0
        %v467 = vand.u32 %v326, 4294901760
        %468 = vmatpush1.xpose.msra.mxu0 %v467
        %469 = vmatprep.subr.mxu0 0.0
        %v470 = vand.u32 %v419, 4294901760
        %471 = vmatpush2.xpose.msra.mxu0 %v470
        %472 = vmatprep.subr.mxu0 0.0
        %v473 = vand.u32 %v416, 4294901760
        %474 = vmatpush2.xpose.msra.mxu0 %v473
        %475 = vmatprep.subr.mxu0 0.0
        %v476 = vand.u32 %v413, 4294901760
        %477 = vmatpush2.xpose.msra.mxu0 %v476
        %478 = vmatprep.subr.mxu0 0.0
        %v479 = vand.u32 %v410, 4294901760
        %480 = vmatpush2.xpose.msra.mxu0 %v479
        %481 = vmatprep.subr.mxu0 0.0
        %v482 = vand.u32 %v407, 4294901760
        %483 = vmatpush2.xpose.msra.mxu0 %v482
        %484 = vmatprep.subr.mxu0 0.0
        %v485 = vand.u32 %v404, 4294901760
        %486 = vmatpush2.xpose.msra.mxu0 %v485
        %487 = vmatprep.subr.mxu0 0.0
        %v488 = vand.u32 %v401, 4294901760
        %489 = vmatpush2.xpose.msra.mxu0 %v488
        %490 = vmatprep.subr.mxu0 0.0
        %v491 = vand.u32 %v398, 4294901760
        %492 = vmatpush2.xpose.msra.mxu0 %v491
        %493 = vmatprep.subr.mxu0 0.0
        %v494 = vand.u32 %v395, 4294901760
        %495 = vmatpush2.xpose.msra.mxu0 %v494
        %496 = vmatprep.subr.mxu0 0.0
        %v497 = vand.u32 %v392, 4294901760
        %498 = vmatpush2.xpose.msra.mxu0 %v497
        %499 = vmatprep.subr.mxu0 0.0
        %v500 = vand.u32 %v389, 4294901760
        %501 = vmatpush2.xpose.msra.mxu0 %v500
        %502 = vmatprep.subr.mxu0 0.0
        %v503 = vand.u32 %v386, 4294901760
        %504 = vmatpush2.xpose.msra.mxu0 %v503
        %505 = vmatprep.subr.mxu0 0.0
        %v506 = vand.u32 %v383, 4294901760
        %507 = vmatpush2.xpose.msra.mxu0 %v506
        %508 = vmatprep.subr.mxu0 0.0
        %v509 = vand.u32 %v380, 4294901760
        %510 = vmatpush2.xpose.msra.mxu0 %v509
        %511 = vmatprep.subr.mxu0 0.0
        %v512 = vand.u32 %v377, 4294901760
        %513 = vmatpush2.xpose.msra.mxu0 %v512
        %514 = vmatprep.subr.mxu0 0.0
        %v515 = vand.u32 %v374, 4294901760
        %516 = vmatpush2.xpose.msra.mxu0 %v515
        %517 = vmatprep.mubr.f32.mxu0 0.0
        %v518 = vand.u32 %v323, 4294901760
        %v519 = vsub.f32 %v323, %v518
        %v520 = vand.u32 %v519, 4294901760
        %v521 = vsub.f32 %v519, %v520
        %v522 = vand.u32 %v521, 4294901760
        %523 = vmatmul.mubr.f32.gmra.mxu0 %v522
        %v524 = vpop.f32.mrf.mxu0
        %v525 = vadd.f32 %v314, %v524
        %v526 = vpop.f32.mrf.mxu0
        %v527 = vadd.f32 %v318, %v526
        %528 = vdwg.mxu0
        %529 = vmatprep.subr.mxu0 0.0
        %v530 = vand.u32 %v371, 4294901760
        %v531 = vsub.f32 %v371, %v530
        %v532 = vand.u32 %v531, 4294901760
        %v533 = vsub.f32 %v531, %v532
        %v534 = vand.u32 %v533, 4294901760
        %535 = vmatpush1.xpose.msra.mxu0 %v534
        %536 = vmatprep.subr.mxu0 0.0
        %v537 = vand.u32 %v368, 4294901760
        %v538 = vsub.f32 %v368, %v537
        %v539 = vand.u32 %v538, 4294901760
        %v540 = vsub.f32 %v538, %v539
        %v541 = vand.u32 %v540, 4294901760
        %542 = vmatpush1.xpose.msra.mxu0 %v541
        %543 = vmatprep.subr.mxu0 0.0
        %v544 = vand.u32 %v365, 4294901760
        %v545 = vsub.f32 %v365, %v544
        %v546 = vand.u32 %v545, 4294901760
        %v547 = vsub.f32 %v545, %v546
        %v548 = vand.u32 %v547, 4294901760
        %549 = vmatpush1.xpose.msra.mxu0 %v548
        %550 = vmatprep.subr.mxu0 0.0
        %v551 = vand.u32 %v362, 4294901760
        %v552 = vsub.f32 %v362, %v551
        %v553 = vand.u32 %v552, 4294901760
        %v554 = vsub.f32 %v552, %v553
        %v555 = vand.u32 %v554, 4294901760
        %556 = vmatpush1.xpose.msra.mxu0 %v555
        %557 = vmatprep.subr.mxu0 0.0
        %v558 = vand.u32 %v359, 4294901760
        %v559 = vsub.f32 %v359, %v558
        %v560 = vand.u32 %v559, 4294901760
        %v561 = vsub.f32 %v559, %v560
        %v562 = vand.u32 %v561, 4294901760
        %563 = vmatpush1.xpose.msra.mxu0 %v562
        %564 = vmatprep.subr.mxu0 0.0
        %v565 = vand.u32 %v356, 4294901760
        %v566 = vsub.f32 %v356, %v565
        %v567 = vand.u32 %v566, 4294901760
        %v568 = vsub.f32 %v566, %v567
        %v569 = vand.u32 %v568, 4294901760
        %570 = vmatpush1.xpose.msra.mxu0 %v569
        %571 = vmatprep.subr.mxu0 0.0
        %v572 = vand.u32 %v353, 4294901760
        %v573 = vsub.f32 %v353, %v572
        %v574 = vand.u32 %v573, 4294901760
        %v575 = vsub.f32 %v573, %v574
        %v576 = vand.u32 %v575, 4294901760
        %577 = vmatpush1.xpose.msra.mxu0 %v576
        %578 = vmatprep.subr.mxu0 0.0
        %v579 = vand.u32 %v350, 4294901760
        %v580 = vsub.f32 %v350, %v579
        %v581 = vand.u32 %v580, 4294901760
        %v582 = vsub.f32 %v580, %v581
        %v583 = vand.u32 %v582, 4294901760
        %584 = vmatpush1.xpose.msra.mxu0 %v583
        %585 = vmatprep.subr.mxu0 0.0
        %v586 = vand.u32 %v347, 4294901760
        %v587 = vsub.f32 %v347, %v586
        %v588 = vand.u32 %v587, 4294901760
        %v589 = vsub.f32 %v587, %v588
        %v590 = vand.u32 %v589, 4294901760
        %591 = vmatpush1.xpose.msra.mxu0 %v590
        %592 = vmatprep.subr.mxu0 0.0
        %v593 = vand.u32 %v344, 4294901760
        %v594 = vsub.f32 %v344, %v593
        %v595 = vand.u32 %v594, 4294901760
        %v596 = vsub.f32 %v594, %v595
        %v597 = vand.u32 %v596, 4294901760
        %598 = vmatpush1.xpose.msra.mxu0 %v597
        %599 = vmatprep.subr.mxu0 0.0
        %v600 = vand.u32 %v341, 4294901760
        %v601 = vsub.f32 %v341, %v600
        %v602 = vand.u32 %v601, 4294901760
        %v603 = vsub.f32 %v601, %v602
        %v604 = vand.u32 %v603, 4294901760
        %605 = vmatpush1.xpose.msra.mxu0 %v604
        %606 = vmatprep.subr.mxu0 0.0
        %v607 = vand.u32 %v338, 4294901760
        %v608 = vsub.f32 %v338, %v607
        %v609 = vand.u32 %v608, 4294901760
        %v610 = vsub.f32 %v608, %v609
        %v611 = vand.u32 %v610, 4294901760
        %612 = vmatpush1.xpose.msra.mxu0 %v611
        %613 = vmatprep.subr.mxu0 0.0
        %v614 = vand.u32 %v335, 4294901760
        %v615 = vsub.f32 %v335, %v614
        %v616 = vand.u32 %v615, 4294901760
        %v617 = vsub.f32 %v615, %v616
        %v618 = vand.u32 %v617, 4294901760
        %619 = vmatpush1.xpose.msra.mxu0 %v618
        %620 = vmatprep.subr.mxu0 0.0
        %v621 = vand.u32 %v332, 4294901760
        %v622 = vsub.f32 %v332, %v621
        %v623 = vand.u32 %v622, 4294901760
        %v624 = vsub.f32 %v622, %v623
        %v625 = vand.u32 %v624, 4294901760
        %626 = vmatpush1.xpose.msra.mxu0 %v625
        %627 = vmatprep.subr.mxu0 0.0
        %v628 = vand.u32 %v329, 4294901760
        %v629 = vsub.f32 %v329, %v628
        %v630 = vand.u32 %v629, 4294901760
        %v631 = vsub.f32 %v629, %v630
        %v632 = vand.u32 %v631, 4294901760
        %633 = vmatpush1.xpose.msra.mxu0 %v632
        %634 = vmatprep.subr.mxu0 0.0
        %v635 = vand.u32 %v326, 4294901760
        %v636 = vsub.f32 %v326, %v635
        %v637 = vand.u32 %v636, 4294901760
        %v638 = vsub.f32 %v636, %v637
        %v639 = vand.u32 %v638, 4294901760
        %640 = vmatpush1.xpose.msra.mxu0 %v639
        %641 = vmatprep.subr.mxu0 0.0
        %v642 = vand.u32 %v419, 4294901760
        %v643 = vsub.f32 %v419, %v642
        %v644 = vand.u32 %v643, 4294901760
        %v645 = vsub.f32 %v643, %v644
        %v646 = vand.u32 %v645, 4294901760
        %647 = vmatpush2.xpose.msra.mxu0 %v646
        %648 = vmatprep.subr.mxu0 0.0
        %v649 = vand.u32 %v416, 4294901760
        %v650 = vsub.f32 %v416, %v649
        %v651 = vand.u32 %v650, 4294901760
        %v652 = vsub.f32 %v650, %v651
        %v653 = vand.u32 %v652, 4294901760
        %654 = vmatpush2.xpose.msra.mxu0 %v653
        %655 = vmatprep.subr.mxu0 0.0
        %v656 = vand.u32 %v413, 4294901760
        %v657 = vsub.f32 %v413, %v656
        %v658 = vand.u32 %v657, 4294901760
        %v659 = vsub.f32 %v657, %v658
        %v660 = vand.u32 %v659, 4294901760
        %661 = vmatpush2.xpose.msra.mxu0 %v660
        %662 = vmatprep.subr.mxu0 0.0
        %v663 = vand.u32 %v410, 4294901760
        %v664 = vsub.f32 %v410, %v663
        %v665 = vand.u32 %v664, 4294901760
        %v666 = vsub.f32 %v664, %v665
        %v667 = vand.u32 %v666, 4294901760
        %668 = vmatpush2.xpose.msra.mxu0 %v667
        %669 = vmatprep.subr.mxu0 0.0
        %v670 = vand.u32 %v407, 4294901760
        %v671 = vsub.f32 %v407, %v670
        %v672 = vand.u32 %v671, 4294901760
        %v673 = vsub.f32 %v671, %v672
        %v674 = vand.u32 %v673, 4294901760
        %675 = vmatpush2.xpose.msra.mxu0 %v674
        %676 = vmatprep.subr.mxu0 0.0
        %v677 = vand.u32 %v404, 4294901760
        %v678 = vsub.f32 %v404, %v677
        %v679 = vand.u32 %v678, 4294901760
        %v680 = vsub.f32 %v678, %v679
        %v681 = vand.u32 %v680, 4294901760
        %682 = vmatpush2.xpose.msra.mxu0 %v681
        %683 = vmatprep.subr.mxu0 0.0
        %v684 = vand.u32 %v401, 4294901760
        %v685 = vsub.f32 %v401, %v684
        %v686 = vand.u32 %v685, 4294901760
        %v687 = vsub.f32 %v685, %v686
        %v688 = vand.u32 %v687, 4294901760
        %689 = vmatpush2.xpose.msra.mxu0 %v688
        %690 = vmatprep.subr.mxu0 0.0
        %v691 = vand.u32 %v398, 4294901760
        %v692 = vsub.f32 %v398, %v691
        %v693 = vand.u32 %v692, 4294901760
        %v694 = vsub.f32 %v692, %v693
        %v695 = vand.u32 %v694, 4294901760
        %696 = vmatpush2.xpose.msra.mxu0 %v695
        %697 = vmatprep.subr.mxu0 0.0
        %v698 = vand.u32 %v395, 4294901760
        %v699 = vsub.f32 %v395, %v698
        %v700 = vand.u32 %v699, 4294901760
        %v701 = vsub.f32 %v699, %v700
        %v702 = vand.u32 %v701, 4294901760
        %703 = vmatpush2.xpose.msra.mxu0 %v702
        %704 = vmatprep.subr.mxu0 0.0
        %v705 = vand.u32 %v392, 4294901760
        %v706 = vsub.f32 %v392, %v705
        %v707 = vand.u32 %v706, 4294901760
        %v708 = vsub.f32 %v706, %v707
        %v709 = vand.u32 %v708, 4294901760
        %710 = vmatpush2.xpose.msra.mxu0 %v709
        %711 = vmatprep.subr.mxu0 0.0
        %v712 = vand.u32 %v389, 4294901760
        %v713 = vsub.f32 %v389, %v712
        %v714 = vand.u32 %v713, 4294901760
        %v715 = vsub.f32 %v713, %v714
        %v716 = vand.u32 %v715, 4294901760
        %717 = vmatpush2.xpose.msra.mxu0 %v716
        %718 = vmatprep.subr.mxu0 0.0
        %v719 = vand.u32 %v386, 4294901760
        %v720 = vsub.f32 %v386, %v719
        %v721 = vand.u32 %v720, 4294901760
        %v722 = vsub.f32 %v720, %v721
        %v723 = vand.u32 %v722, 4294901760
        %724 = vmatpush2.xpose.msra.mxu0 %v723
        %725 = vmatprep.subr.mxu0 0.0
        %v726 = vand.u32 %v383, 4294901760
        %v727 = vsub.f32 %v383, %v726
        %v728 = vand.u32 %v727, 4294901760
        %v729 = vsub.f32 %v727, %v728
        %v730 = vand.u32 %v729, 4294901760
        %731 = vmatpush2.xpose.msra.mxu0 %v730
        %732 = vmatprep.subr.mxu0 0.0
        %v733 = vand.u32 %v380, 4294901760
        %v734 = vsub.f32 %v380, %v733
        %v735 = vand.u32 %v734, 4294901760
        %v736 = vsub.f32 %v734, %v735
        %v737 = vand.u32 %v736, 4294901760
        %738 = vmatpush2.xpose.msra.mxu0 %v737
        %739 = vmatprep.subr.mxu0 0.0
        %v740 = vand.u32 %v377, 4294901760
        %v741 = vsub.f32 %v377, %v740
        %v742 = vand.u32 %v741, 4294901760
        %v743 = vsub.f32 %v741, %v742
        %v744 = vand.u32 %v743, 4294901760
        %745 = vmatpush2.xpose.msra.mxu0 %v744
        %746 = vmatprep.subr.mxu0 0.0
        %v747 = vand.u32 %v374, 4294901760
        %v748 = vsub.f32 %v374, %v747
        %v749 = vand.u32 %v748, 4294901760
        %v750 = vsub.f32 %v748, %v749
        %v751 = vand.u32 %v750, 4294901760
        %752 = vmatpush2.xpose.msra.mxu0 %v751
        %753 = vmatprep.mubr.f32.mxu0 0.0
        %v754 = vand.u32 %v323, 4294901760
        %755 = vmatmul.mubr.f32.gmra.mxu0 %v754
        %v756 = vpop.f32.mrf.mxu0
        %v757 = vadd.f32 %v525, %v756
        %v758 = vpop.f32.mrf.mxu0
        %v759 = vadd.f32 %v527, %v758
        %760 = vdwg.mxu0
        %761 = vmatprep.subr.mxu0 0.0
        %v762 = vand.u32 %v371, 4294901760
        %v763 = vsub.f32 %v371, %v762
        %764 = vmatpush1.xpose.msra.mxu0 %v763
        %765 = vmatprep.subr.mxu0 0.0
        %v766 = vand.u32 %v368, 4294901760
        %v767 = vsub.f32 %v368, %v766
        %768 = vmatpush1.xpose.msra.mxu0 %v767
        %769 = vmatprep.subr.mxu0 0.0
        %v770 = vand.u32 %v365, 4294901760
        %v771 = vsub.f32 %v365, %v770
        %772 = vmatpush1.xpose.msra.mxu0 %v771
        %773 = vmatprep.subr.mxu0 0.0
        %v774 = vand.u32 %v362, 4294901760
        %v775 = vsub.f32 %v362, %v774
        %776 = vmatpush1.xpose.msra.mxu0 %v775
        %777 = vmatprep.subr.mxu0 0.0
        %v778 = vand.u32 %v359, 4294901760
        %v779 = vsub.f32 %v359, %v778
        %780 = vmatpush1.xpose.msra.mxu0 %v779
        %781 = vmatprep.subr.mxu0 0.0
        %v782 = vand.u32 %v356, 4294901760
        %v783 = vsub.f32 %v356, %v782
        %784 = vmatpush1.xpose.msra.mxu0 %v783
        %785 = vmatprep.subr.mxu0 0.0
        %v786 = vand.u32 %v353, 4294901760
        %v787 = vsub.f32 %v353, %v786
        %788 = vmatpush1.xpose.msra.mxu0 %v787
        %789 = vmatprep.subr.mxu0 0.0
        %v790 = vand.u32 %v350, 4294901760
        %v791 = vsub.f32 %v350, %v790
        %792 = vmatpush1.xpose.msra.mxu0 %v791
        %793 = vmatprep.subr.mxu0 0.0
        %v794 = vand.u32 %v347, 4294901760
        %v795 = vsub.f32 %v347, %v794
        %796 = vmatpush1.xpose.msra.mxu0 %v795
        %797 = vmatprep.subr.mxu0 0.0
        %v798 = vand.u32 %v344, 4294901760
        %v799 = vsub.f32 %v344, %v798
        %800 = vmatpush1.xpose.msra.mxu0 %v799
        %801 = vmatprep.subr.mxu0 0.0
        %v802 = vand.u32 %v341, 4294901760
        %v803 = vsub.f32 %v341, %v802
        %804 = vmatpush1.xpose.msra.mxu0 %v803
        %805 = vmatprep.subr.mxu0 0.0
        %v806 = vand.u32 %v338, 4294901760
        %v807 = vsub.f32 %v338, %v806
        %808 = vmatpush1.xpose.msra.mxu0 %v807
        %809 = vmatprep.subr.mxu0 0.0
        %v810 = vand.u32 %v335, 4294901760
        %v811 = vsub.f32 %v335, %v810
        %812 = vmatpush1.xpose.msra.mxu0 %v811
        %813 = vmatprep.subr.mxu0 0.0
        %v814 = vand.u32 %v332, 4294901760
        %v815 = vsub.f32 %v332, %v814
        %816 = vmatpush1.xpose.msra.mxu0 %v815
        %817 = vmatprep.subr.mxu0 0.0
        %v818 = vand.u32 %v329, 4294901760
        %v819 = vsub.f32 %v329, %v818
        %820 = vmatpush1.xpose.msra.mxu0 %v819
        %821 = vmatprep.subr.mxu0 0.0
        %v822 = vand.u32 %v326, 4294901760
        %v823 = vsub.f32 %v326, %v822
        %824 = vmatpush1.xpose.msra.mxu0 %v823
        %825 = vmatprep.subr.mxu0 0.0
        %v826 = vand.u32 %v419, 4294901760
        %v827 = vsub.f32 %v419, %v826
        %828 = vmatpush2.xpose.msra.mxu0 %v827
        %829 = vmatprep.subr.mxu0 0.0
        %v830 = vand.u32 %v416, 4294901760
        %v831 = vsub.f32 %v416, %v830
        %832 = vmatpush2.xpose.msra.mxu0 %v831
        %833 = vmatprep.subr.mxu0 0.0
        %v834 = vand.u32 %v413, 4294901760
        %v835 = vsub.f32 %v413, %v834
        %836 = vmatpush2.xpose.msra.mxu0 %v835
        %837 = vmatprep.subr.mxu0 0.0
        %v838 = vand.u32 %v410, 4294901760
        %v839 = vsub.f32 %v410, %v838
        %840 = vmatpush2.xpose.msra.mxu0 %v839
        %841 = vmatprep.subr.mxu0 0.0
        %v842 = vand.u32 %v407, 4294901760
        %v843 = vsub.f32 %v407, %v842
        %844 = vmatpush2.xpose.msra.mxu0 %v843
        %845 = vmatprep.subr.mxu0 0.0
        %v846 = vand.u32 %v404, 4294901760
        %v847 = vsub.f32 %v404, %v846
        %848 = vmatpush2.xpose.msra.mxu0 %v847
        %849 = vmatprep.subr.mxu0 0.0
        %v850 = vand.u32 %v401, 4294901760
        %v851 = vsub.f32 %v401, %v850
        %852 = vmatpush2.xpose.msra.mxu0 %v851
        %853 = vmatprep.subr.mxu0 0.0
        %v854 = vand.u32 %v398, 4294901760
        %v855 = vsub.f32 %v398, %v854
        %856 = vmatpush2.xpose.msra.mxu0 %v855
        %857 = vmatprep.subr.mxu0 0.0
        %v858 = vand.u32 %v395, 4294901760
        %v859 = vsub.f32 %v395, %v858
        %860 = vmatpush2.xpose.msra.mxu0 %v859
        %861 = vmatprep.subr.mxu0 0.0
        %v862 = vand.u32 %v392, 4294901760
        %v863 = vsub.f32 %v392, %v862
        %864 = vmatpush2.xpose.msra.mxu0 %v863
        %865 = vmatprep.subr.mxu0 0.0
        %v866 = vand.u32 %v389, 4294901760
        %v867 = vsub.f32 %v389, %v866
        %868 = vmatpush2.xpose.msra.mxu0 %v867
        %869 = vmatprep.subr.mxu0 0.0
        %v870 = vand.u32 %v386, 4294901760
        %v871 = vsub.f32 %v386, %v870
        %872 = vmatpush2.xpose.msra.mxu0 %v871
        %873 = vmatprep.subr.mxu0 0.0
        %v874 = vand.u32 %v383, 4294901760
        %v875 = vsub.f32 %v383, %v874
        %876 = vmatpush2.xpose.msra.mxu0 %v875
        %877 = vmatprep.subr.mxu0 0.0
        %v878 = vand.u32 %v380, 4294901760
        %v879 = vsub.f32 %v380, %v878
        %880 = vmatpush2.xpose.msra.mxu0 %v879
        %881 = vmatprep.subr.mxu0 0.0
        %v882 = vand.u32 %v377, 4294901760
        %v883 = vsub.f32 %v377, %v882
        %884 = vmatpush2.xpose.msra.mxu0 %v883
        %885 = vmatprep.subr.mxu0 0.0
        %v886 = vand.u32 %v374, 4294901760
        %v887 = vsub.f32 %v374, %v886
        %888 = vmatpush2.xpose.msra.mxu0 %v887
        %889 = vmatprep.mubr.f32.mxu0 0.0
        %v890 = vand.u32 %v323, 4294901760
        %v891 = vsub.f32 %v323, %v890
        %892 = vmatmul.mubr.f32.gmra.mxu0 %v891
        %v893 = vpop.f32.mrf.mxu0
        %v894 = vadd.f32 %v757, %v893
        %v895 = vpop.f32.mrf.mxu0
        %v896 = vadd.f32 %v759, %v895
        %897 = vdwg.mxu0
        %898 = vmatprep.subr.mxu0 0.0
        %v899 = vand.u32 %v371, 4294901760
        %900 = vmatpush1.xpose.msra.mxu0 %v899
        %901 = vmatprep.subr.mxu0 0.0
        %v902 = vand.u32 %v368, 4294901760
        %903 = vmatpush1.xpose.msra.mxu0 %v902
        %904 = vmatprep.subr.mxu0 0.0
        %v905 = vand.u32 %v365, 4294901760
        %906 = vmatpush1.xpose.msra.mxu0 %v905
        %907 = vmatprep.subr.mxu0 0.0
        %v908 = vand.u32 %v362, 4294901760
        %909 = vmatpush1.xpose.msra.mxu0 %v908
        %910 = vmatprep.subr.mxu0 0.0
        %v911 = vand.u32 %v359, 4294901760
        %912 = vmatpush1.xpose.msra.mxu0 %v911
        %913 = vmatprep.subr.mxu0 0.0
        %v914 = vand.u32 %v356, 4294901760
        %915 = vmatpush1.xpose.msra.mxu0 %v914
        %916 = vmatprep.subr.mxu0 0.0
        %v917 = vand.u32 %v353, 4294901760
        %918 = vmatpush1.xpose.msra.mxu0 %v917
        %919 = vmatprep.subr.mxu0 0.0
        %v920 = vand.u32 %v350, 4294901760
        %921 = vmatpush1.xpose.msra.mxu0 %v920
        %922 = vmatprep.subr.mxu0 0.0
        %v923 = vand.u32 %v347, 4294901760
        %924 = vmatpush1.xpose.msra.mxu0 %v923
        %925 = vmatprep.subr.mxu0 0.0
        %v926 = vand.u32 %v344, 4294901760
        %927 = vmatpush1.xpose.msra.mxu0 %v926
        %928 = vmatprep.subr.mxu0 0.0
        %v929 = vand.u32 %v341, 4294901760
        %930 = vmatpush1.xpose.msra.mxu0 %v929
        %931 = vmatprep.subr.mxu0 0.0
        %v932 = vand.u32 %v338, 4294901760
        %933 = vmatpush1.xpose.msra.mxu0 %v932
        %934 = vmatprep.subr.mxu0 0.0
        %v935 = vand.u32 %v335, 4294901760
        %936 = vmatpush1.xpose.msra.mxu0 %v935
        %937 = vmatprep.subr.mxu0 0.0
        %v938 = vand.u32 %v332, 4294901760
        %939 = vmatpush1.xpose.msra.mxu0 %v938
        %940 = vmatprep.subr.mxu0 0.0
        %v941 = vand.u32 %v329, 4294901760
        %942 = vmatpush1.xpose.msra.mxu0 %v941
        %943 = vmatprep.subr.mxu0 0.0
        %v944 = vand.u32 %v326, 4294901760
        %945 = vmatpush1.xpose.msra.mxu0 %v944
        %946 = vmatprep.subr.mxu0 0.0
        %v947 = vand.u32 %v419, 4294901760
        %948 = vmatpush2.xpose.msra.mxu0 %v947
        %949 = vmatprep.subr.mxu0 0.0
        %v950 = vand.u32 %v416, 4294901760
        %951 = vmatpush2.xpose.msra.mxu0 %v950
        %952 = vmatprep.subr.mxu0 0.0
        %v953 = vand.u32 %v413, 4294901760
        %954 = vmatpush2.xpose.msra.mxu0 %v953
        %955 = vmatprep.subr.mxu0 0.0
        %v956 = vand.u32 %v410, 4294901760
        %957 = vmatpush2.xpose.msra.mxu0 %v956
        %958 = vmatprep.subr.mxu0 0.0
        %v959 = vand.u32 %v407, 4294901760
        %960 = vmatpush2.xpose.msra.mxu0 %v959
        %961 = vmatprep.subr.mxu0 0.0
        %v962 = vand.u32 %v404, 4294901760
        %963 = vmatpush2.xpose.msra.mxu0 %v962
        %964 = vmatprep.subr.mxu0 0.0
        %v965 = vand.u32 %v401, 4294901760
        %966 = vmatpush2.xpose.msra.mxu0 %v965
        %967 = vmatprep.subr.mxu0 0.0
        %v968 = vand.u32 %v398, 4294901760
        %969 = vmatpush2.xpose.msra.mxu0 %v968
        %970 = vmatprep.subr.mxu0 0.0
        %v971 = vand.u32 %v395, 4294901760
        %972 = vmatpush2.xpose.msra.mxu0 %v971
        %973 = vmatprep.subr.mxu0 0.0
        %v974 = vand.u32 %v392, 4294901760
        %975 = vmatpush2.xpose.msra.mxu0 %v974
        %976 = vmatprep.subr.mxu0 0.0
        %v977 = vand.u32 %v389, 4294901760
        %978 = vmatpush2.xpose.msra.mxu0 %v977
        %979 = vmatprep.subr.mxu0 0.0
        %v980 = vand.u32 %v386, 4294901760
        %981 = vmatpush2.xpose.msra.mxu0 %v980
        %982 = vmatprep.subr.mxu0 0.0
        %v983 = vand.u32 %v383, 4294901760
        %984 = vmatpush2.xpose.msra.mxu0 %v983
        %985 = vmatprep.subr.mxu0 0.0
        %v986 = vand.u32 %v380, 4294901760
        %987 = vmatpush2.xpose.msra.mxu0 %v986
        %988 = vmatprep.subr.mxu0 0.0
        %v989 = vand.u32 %v377, 4294901760
        %990 = vmatpush2.xpose.msra.mxu0 %v989
        %991 = vmatprep.subr.mxu0 0.0
        %v992 = vand.u32 %v374, 4294901760
        %993 = vmatpush2.xpose.msra.mxu0 %v992
        %994 = vmatprep.mubr.f32.mxu0 0.0
        %v995 = vand.u32 %v323, 4294901760
        %v996 = vsub.f32 %v323, %v995
        %v997 = vand.u32 %v996, 4294901760
        %998 = vmatmul.mubr.f32.gmra.mxu0 %v997
        %v999 = vpop.f32.mrf.mxu0
        %v1000 = vadd.f32 %v894, %v999
        %v1001 = vpop.f32.mrf.mxu0
        %v1002 = vadd.f32 %v896, %v1001
        %1003 = vdwg.mxu0
        %1004 = vmatprep.subr.mxu0 0.0
        %v1005 = vand.u32 %v371, 4294901760
        %v1006 = vsub.f32 %v371, %v1005
        %v1007 = vand.u32 %v1006, 4294901760
        %1008 = vmatpush1.xpose.msra.mxu0 %v1007
        %1009 = vmatprep.subr.mxu0 0.0
        %v1010 = vand.u32 %v368, 4294901760
        %v1011 = vsub.f32 %v368, %v1010
        %v1012 = vand.u32 %v1011, 4294901760
        %1013 = vmatpush1.xpose.msra.mxu0 %v1012
        %1014 = vmatprep.subr.mxu0 0.0
        %v1015 = vand.u32 %v365, 4294901760
        %v1016 = vsub.f32 %v365, %v1015
        %v1017 = vand.u32 %v1016, 4294901760
        %1018 = vmatpush1.xpose.msra.mxu0 %v1017
        %1019 = vmatprep.subr.mxu0 0.0
        %v1020 = vand.u32 %v362, 4294901760
        %v1021 = vsub.f32 %v362, %v1020
        %v1022 = vand.u32 %v1021, 4294901760
        %1023 = vmatpush1.xpose.msra.mxu0 %v1022
        %1024 = vmatprep.subr.mxu0 0.0
        %v1025 = vand.u32 %v359, 4294901760
        %v1026 = vsub.f32 %v359, %v1025
        %v1027 = vand.u32 %v1026, 4294901760
        %1028 = vmatpush1.xpose.msra.mxu0 %v1027
        %1029 = vmatprep.subr.mxu0 0.0
        %v1030 = vand.u32 %v356, 4294901760
        %v1031 = vsub.f32 %v356, %v1030
        %v1032 = vand.u32 %v1031, 4294901760
        %1033 = vmatpush1.xpose.msra.mxu0 %v1032
        %1034 = vmatprep.subr.mxu0 0.0
        %v1035 = vand.u32 %v353, 4294901760
        %v1036 = vsub.f32 %v353, %v1035
        %v1037 = vand.u32 %v1036, 4294901760
        %1038 = vmatpush1.xpose.msra.mxu0 %v1037
        %1039 = vmatprep.subr.mxu0 0.0
        %v1040 = vand.u32 %v350, 4294901760
        %v1041 = vsub.f32 %v350, %v1040
        %v1042 = vand.u32 %v1041, 4294901760
        %1043 = vmatpush1.xpose.msra.mxu0 %v1042
        %1044 = vmatprep.subr.mxu0 0.0
        %v1045 = vand.u32 %v347, 4294901760
        %v1046 = vsub.f32 %v347, %v1045
        %v1047 = vand.u32 %v1046, 4294901760
        %1048 = vmatpush1.xpose.msra.mxu0 %v1047
        %1049 = vmatprep.subr.mxu0 0.0
        %v1050 = vand.u32 %v344, 4294901760
        %v1051 = vsub.f32 %v344, %v1050
        %v1052 = vand.u32 %v1051, 4294901760
        %1053 = vmatpush1.xpose.msra.mxu0 %v1052
        %1054 = vmatprep.subr.mxu0 0.0
        %v1055 = vand.u32 %v341, 4294901760
        %v1056 = vsub.f32 %v341, %v1055
        %v1057 = vand.u32 %v1056, 4294901760
        %1058 = vmatpush1.xpose.msra.mxu0 %v1057
        %1059 = vmatprep.subr.mxu0 0.0
        %v1060 = vand.u32 %v338, 4294901760
        %v1061 = vsub.f32 %v338, %v1060
        %v1062 = vand.u32 %v1061, 4294901760
        %1063 = vmatpush1.xpose.msra.mxu0 %v1062
        %1064 = vmatprep.subr.mxu0 0.0
        %v1065 = vand.u32 %v335, 4294901760
        %v1066 = vsub.f32 %v335, %v1065
        %v1067 = vand.u32 %v1066, 4294901760
        %1068 = vmatpush1.xpose.msra.mxu0 %v1067
        %1069 = vmatprep.subr.mxu0 0.0
        %v1070 = vand.u32 %v332, 4294901760
        %v1071 = vsub.f32 %v332, %v1070
        %v1072 = vand.u32 %v1071, 4294901760
        %1073 = vmatpush1.xpose.msra.mxu0 %v1072
        %1074 = vmatprep.subr.mxu0 0.0
        %v1075 = vand.u32 %v329, 4294901760
        %v1076 = vsub.f32 %v329, %v1075
        %v1077 = vand.u32 %v1076, 4294901760
        %1078 = vmatpush1.xpose.msra.mxu0 %v1077
        %1079 = vmatprep.subr.mxu0 0.0
        %v1080 = vand.u32 %v326, 4294901760
        %v1081 = vsub.f32 %v326, %v1080
        %v1082 = vand.u32 %v1081, 4294901760
        %1083 = vmatpush1.xpose.msra.mxu0 %v1082
        %1084 = vmatprep.subr.mxu0 0.0
        %v1085 = vand.u32 %v419, 4294901760
        %v1086 = vsub.f32 %v419, %v1085
        %v1087 = vand.u32 %v1086, 4294901760
        %1088 = vmatpush2.xpose.msra.mxu0 %v1087
        %1089 = vmatprep.subr.mxu0 0.0
        %v1090 = vand.u32 %v416, 4294901760
        %v1091 = vsub.f32 %v416, %v1090
        %v1092 = vand.u32 %v1091, 4294901760
        %1093 = vmatpush2.xpose.msra.mxu0 %v1092
        %1094 = vmatprep.subr.mxu0 0.0
        %v1095 = vand.u32 %v413, 4294901760
        %v1096 = vsub.f32 %v413, %v1095
        %v1097 = vand.u32 %v1096, 4294901760
        %1098 = vmatpush2.xpose.msra.mxu0 %v1097
        %1099 = vmatprep.subr.mxu0 0.0
        %v1100 = vand.u32 %v410, 4294901760
        %v1101 = vsub.f32 %v410, %v1100
        %v1102 = vand.u32 %v1101, 4294901760
        %1103 = vmatpush2.xpose.msra.mxu0 %v1102
        %1104 = vmatprep.subr.mxu0 0.0
        %v1105 = vand.u32 %v407, 4294901760
        %v1106 = vsub.f32 %v407, %v1105
        %v1107 = vand.u32 %v1106, 4294901760
        %1108 = vmatpush2.xpose.msra.mxu0 %v1107
        %1109 = vmatprep.subr.mxu0 0.0
        %v1110 = vand.u32 %v404, 4294901760
        %v1111 = vsub.f32 %v404, %v1110
        %v1112 = vand.u32 %v1111, 4294901760
        %1113 = vmatpush2.xpose.msra.mxu0 %v1112
        %1114 = vmatprep.subr.mxu0 0.0
        %v1115 = vand.u32 %v401, 4294901760
        %v1116 = vsub.f32 %v401, %v1115
        %v1117 = vand.u32 %v1116, 4294901760
        %1118 = vmatpush2.xpose.msra.mxu0 %v1117
        %1119 = vmatprep.subr.mxu0 0.0
        %v1120 = vand.u32 %v398, 4294901760
        %v1121 = vsub.f32 %v398, %v1120
        %v1122 = vand.u32 %v1121, 4294901760
        %1123 = vmatpush2.xpose.msra.mxu0 %v1122
        %1124 = vmatprep.subr.mxu0 0.0
        %v1125 = vand.u32 %v395, 4294901760
        %v1126 = vsub.f32 %v395, %v1125
        %v1127 = vand.u32 %v1126, 4294901760
        %1128 = vmatpush2.xpose.msra.mxu0 %v1127
        %1129 = vmatprep.subr.mxu0 0.0
        %v1130 = vand.u32 %v392, 4294901760
        %v1131 = vsub.f32 %v392, %v1130
        %v1132 = vand.u32 %v1131, 4294901760
        %1133 = vmatpush2.xpose.msra.mxu0 %v1132
        %1134 = vmatprep.subr.mxu0 0.0
        %v1135 = vand.u32 %v389, 4294901760
        %v1136 = vsub.f32 %v389, %v1135
        %v1137 = vand.u32 %v1136, 4294901760
        %1138 = vmatpush2.xpose.msra.mxu0 %v1137
        %1139 = vmatprep.subr.mxu0 0.0
        %v1140 = vand.u32 %v386, 4294901760
        %v1141 = vsub.f32 %v386, %v1140
        %v1142 = vand.u32 %v1141, 4294901760
        %1143 = vmatpush2.xpose.msra.mxu0 %v1142
        %1144 = vmatprep.subr.mxu0 0.0
        %v1145 = vand.u32 %v383, 4294901760
        %v1146 = vsub.f32 %v383, %v1145
        %v1147 = vand.u32 %v1146, 4294901760
        %1148 = vmatpush2.xpose.msra.mxu0 %v1147
        %1149 = vmatprep.subr.mxu0 0.0
        %v1150 = vand.u32 %v380, 4294901760
        %v1151 = vsub.f32 %v380, %v1150
        %v1152 = vand.u32 %v1151, 4294901760
        %1153 = vmatpush2.xpose.msra.mxu0 %v1152
        %1154 = vmatprep.subr.mxu0 0.0
        %v1155 = vand.u32 %v377, 4294901760
        %v1156 = vsub.f32 %v377, %v1155
        %v1157 = vand.u32 %v1156, 4294901760
        %1158 = vmatpush2.xpose.msra.mxu0 %v1157
        %1159 = vmatprep.subr.mxu0 0.0
        %v1160 = vand.u32 %v374, 4294901760
        %v1161 = vsub.f32 %v374, %v1160
        %v1162 = vand.u32 %v1161, 4294901760
        %1163 = vmatpush2.xpose.msra.mxu0 %v1162
        %1164 = vmatprep.mubr.f32.mxu0 0.0
        %v1165 = vand.u32 %v323, 4294901760
        %1166 = vmatmul.mubr.f32.gmra.mxu0 %v1165
        %v1167 = vpop.f32.mrf.mxu0
        %v1168 = vadd.f32 %v1000, %v1167
        %v1169 = vpop.f32.mrf.mxu0
        %v1170 = vadd.f32 %v1002, %v1169
        %1171 = vdwg.mxu0
        %1172 = vmatprep.subr.mxu0 0.0
        %v1173 = vand.u32 %v371, 4294901760
        %1174 = vmatpush1.xpose.msra.mxu0 %v1173
        %1175 = vmatprep.subr.mxu0 0.0
        %v1176 = vand.u32 %v368, 4294901760
        %1177 = vmatpush1.xpose.msra.mxu0 %v1176
        %1178 = vmatprep.subr.mxu0 0.0
        %v1179 = vand.u32 %v365, 4294901760
        %1180 = vmatpush1.xpose.msra.mxu0 %v1179
        %1181 = vmatprep.subr.mxu0 0.0
        %v1182 = vand.u32 %v362, 4294901760
        %1183 = vmatpush1.xpose.msra.mxu0 %v1182
        %1184 = vmatprep.subr.mxu0 0.0
        %v1185 = vand.u32 %v359, 4294901760
        %1186 = vmatpush1.xpose.msra.mxu0 %v1185
        %1187 = vmatprep.subr.mxu0 0.0
        %v1188 = vand.u32 %v356, 4294901760
        %1189 = vmatpush1.xpose.msra.mxu0 %v1188
        %1190 = vmatprep.subr.mxu0 0.0
        %v1191 = vand.u32 %v353, 4294901760
        %1192 = vmatpush1.xpose.msra.mxu0 %v1191
        %1193 = vmatprep.subr.mxu0 0.0
        %v1194 = vand.u32 %v350, 4294901760
        %1195 = vmatpush1.xpose.msra.mxu0 %v1194
        %1196 = vmatprep.subr.mxu0 0.0
        %v1197 = vand.u32 %v347, 4294901760
        %1198 = vmatpush1.xpose.msra.mxu0 %v1197
        %1199 = vmatprep.subr.mxu0 0.0
        %v1200 = vand.u32 %v344, 4294901760
        %1201 = vmatpush1.xpose.msra.mxu0 %v1200
        %1202 = vmatprep.subr.mxu0 0.0
        %v1203 = vand.u32 %v341, 4294901760
        %1204 = vmatpush1.xpose.msra.mxu0 %v1203
        %1205 = vmatprep.subr.mxu0 0.0
        %v1206 = vand.u32 %v338, 4294901760
        %1207 = vmatpush1.xpose.msra.mxu0 %v1206
        %1208 = vmatprep.subr.mxu0 0.0
        %v1209 = vand.u32 %v335, 4294901760
        %1210 = vmatpush1.xpose.msra.mxu0 %v1209
        %1211 = vmatprep.subr.mxu0 0.0
        %v1212 = vand.u32 %v332, 4294901760
        %1213 = vmatpush1.xpose.msra.mxu0 %v1212
        %1214 = vmatprep.subr.mxu0 0.0
        %v1215 = vand.u32 %v329, 4294901760
        %1216 = vmatpush1.xpose.msra.mxu0 %v1215
        %1217 = vmatprep.subr.mxu0 0.0
        %v1218 = vand.u32 %v326, 4294901760
        %1219 = vmatpush1.xpose.msra.mxu0 %v1218
        %1220 = vmatprep.subr.mxu0 0.0
        %v1221 = vand.u32 %v419, 4294901760
        %1222 = vmatpush2.xpose.msra.mxu0 %v1221
        %1223 = vmatprep.subr.mxu0 0.0
        %v1224 = vand.u32 %v416, 4294901760
        %1225 = vmatpush2.xpose.msra.mxu0 %v1224
        %1226 = vmatprep.subr.mxu0 0.0
        %v1227 = vand.u32 %v413, 4294901760
        %1228 = vmatpush2.xpose.msra.mxu0 %v1227
        %1229 = vmatprep.subr.mxu0 0.0
        %v1230 = vand.u32 %v410, 4294901760
        %1231 = vmatpush2.xpose.msra.mxu0 %v1230
        %1232 = vmatprep.subr.mxu0 0.0
        %v1233 = vand.u32 %v407, 4294901760
        %1234 = vmatpush2.xpose.msra.mxu0 %v1233
        %1235 = vmatprep.subr.mxu0 0.0
        %v1236 = vand.u32 %v404, 4294901760
        %1237 = vmatpush2.xpose.msra.mxu0 %v1236
        %1238 = vmatprep.subr.mxu0 0.0
        %v1239 = vand.u32 %v401, 4294901760
        %1240 = vmatpush2.xpose.msra.mxu0 %v1239
        %1241 = vmatprep.subr.mxu0 0.0
        %v1242 = vand.u32 %v398, 4294901760
        %1243 = vmatpush2.xpose.msra.mxu0 %v1242
        %1244 = vmatprep.subr.mxu0 0.0
        %v1245 = vand.u32 %v395, 4294901760
        %1246 = vmatpush2.xpose.msra.mxu0 %v1245
        %1247 = vmatprep.subr.mxu0 0.0
        %v1248 = vand.u32 %v392, 4294901760
        %1249 = vmatpush2.xpose.msra.mxu0 %v1248
        %1250 = vmatprep.subr.mxu0 0.0
        %v1251 = vand.u32 %v389, 4294901760
        %1252 = vmatpush2.xpose.msra.mxu0 %v1251
        %1253 = vmatprep.subr.mxu0 0.0
        %v1254 = vand.u32 %v386, 4294901760
        %1255 = vmatpush2.xpose.msra.mxu0 %v1254
        %1256 = vmatprep.subr.mxu0 0.0
        %v1257 = vand.u32 %v383, 4294901760
        %1258 = vmatpush2.xpose.msra.mxu0 %v1257
        %1259 = vmatprep.subr.mxu0 0.0
        %v1260 = vand.u32 %v380, 4294901760
        %1261 = vmatpush2.xpose.msra.mxu0 %v1260
        %1262 = vmatprep.subr.mxu0 0.0
        %v1263 = vand.u32 %v377, 4294901760
        %1264 = vmatpush2.xpose.msra.mxu0 %v1263
        %1265 = vmatprep.subr.mxu0 0.0
        %v1266 = vand.u32 %v374, 4294901760
        %1267 = vmatpush2.xpose.msra.mxu0 %v1266
        %1268 = vmatprep.mubr.f32.mxu0 0.0
        %v1269 = vand.u32 %v323, 4294901760
        %1270 = vmatmul.mubr.f32.gmra.mxu0 %v1269
        %v1271 = vpop.f32.mrf.mxu0
        %v1272 = vadd.f32 %v1168, %v1271
        %v1273 = vpop.f32.mrf.mxu0
        %v1274 = vadd.f32 %v1170, %v1273
        %1275 = vdwg.mxu0
        %v1278 = vcombine.low %v1272, %v1274
        %v1280 = vunpack.c.l.s4 1966171168
        %v1281 = vunpack.c.0.s8 %v1280
        %v1282 = vlaneseq
        %v1283 = vshrl.u32 %v1282, 7
        %v1284 = vsub.s32 %v1281, %v1283
        %v1285 = vrot.slane %v1278, %v1284
        %v1287 = vunpack.c.l.s4 1966171168
        %v1288 = vunpack.c.0.s8 %v1287
        %v1289 = vlaneseq
        %v1290 = vshrl.u32 %v1289, 7
        %v1291 = vsub.s32 %v1288, %v1290
        %v1292 = vrot.slane %v1285, %v1291
        %v1294 = vlaneseq
        %vm1295 = vcmp.ge.s32.totalorder %v1294, 0
        %vm1296 = vcmp.lt.s32.totalorder %v1294, 256
        %vm1297 = vmand %vm1295, %vm1296
        %1298 = vst.msk [vmem:[%s194] sm:$0x3] %vm1297, %v1292
        %s1299 = sand.u32 %s103, 1
        %s1300 = scalar_lea.sflag [#allocation3], %s1299
        %s1301 = sand.u32 %s103, 1
        %s1302 = smul.addr %s1301, 2
        %s1303 = scalar_lea.vmem [#allocation2], %s1302
        // Predicated region
        $region33: #{tpu_custom_call.1} parent=31 // pred_check
          %p1304 = pneg %p113
        $region34: #{tpu_custom_call.1} parent=31 // pred_check_branch
          %1306 = sbr.rel (%p1304) target = $region36
        $region35: #{tpu_custom_call.1} parent=31 // pred_region
          %s1307 = smul.u32 2, %s17
          %s1309 = ssub.s32 32, 32
          %1310 = vsyncadd %s1300, %s1309
          %s1311 = smul.addr %s1307, 16
          %s1312 = scalar_lea.hbm %s3, %s1311
          %s1314 = sshll.u32 %s1303, 4
          %s1315 = int_to_ptr.vmem [resolvable:$true] %s1314
          %1317 = dma.vmem_to_hbm [thread:$0]  %s1315, 32, %s1312, %s1300
        $region36: #{tpu_custom_call.1} parent=31 // pred_fallthru
          _
      $region32: #{tpu_custom_call.1} parent=5 // pred_fallthru
        _
      %p1318 = scmp.le.s32.totalorder 2, %s12
      // Predicated region
      $region37: #{tpu_custom_call.1} parent=5 // pred_check
        %p1319 = pneg %p1318
      $region38: #{tpu_custom_call.1} parent=5 // pred_check_branch
        %1321 = sbr.rel (%p1319) target = $region40
      $region39: #{tpu_custom_call.1} parent=5 // pred_region
        %s1322 = ssub.s32 %s12, 2
        // Predicated region
        $region41: #{tpu_custom_call.1} parent=39 // pred_check
          %p1323 = pneg %p119
        $region42: #{tpu_custom_call.1} parent=39 // pred_check_branch
          %1325 = sbr.rel (%p1323) target = $region44
        $region43: #{tpu_custom_call.1} parent=39 // pred_region
          %s1326 = sand.u32 %s104, 1
          %s1327 = scalar_lea.sflag [#allocation3], %s1326
          %s1328 = sand.u32 %s104, 1
          %s1329 = smul.addr %s1328, 2
          %s1330 = scalar_lea.vmem [#allocation2], %s1329
          %1331 = dma.done %s1327, 32
        $region44: #{tpu_custom_call.1} parent=39 // pred_fallthru
          _
      $region40: #{tpu_custom_call.1} parent=5 // pred_fallthru
        _
    $region6: #{tpu_custom_call.1} parent=1 // loop_footer
      %s16 = sadd.s32 1, %s12
    $region7: #{tpu_custom_call.1} parent=1 // loop_footer_branch
      %11 = sbr.rel target = $region3
    $region8: #{tpu_custom_call.1} parent=1 // loop_exit
      _
    %1332 = vsyncpa [#allocation3], 1
    %s1333 = scalar_lea.sflag [#allocation3], 1
    %1334 = vsyncpa %s1333, 1

</llo_original>
